<compile_context>
chip_gen: v5e
topology: v5e:2x2
jax: 0.10.0
libtpu: 0.0.40
codegen_flags: <defaults>
</compile_context>

<pallas_src>
import jax
import jax.numpy as jnp
from jax.experimental import pallas as pl
from jax.experimental.pallas import tpu as pltpu


def _round_up(x, m):
    return (x + m - 1) // m * m


def _make_sae_kernel(n_valid, n_padded):
    """n_valid: true n_taxa; n_padded: lane-padded output width."""

    def sae_kernel(x_ref, w1_ref, b1_ref, w2_ref, b2_ref, o_ref):
        # encoder: Linear -> ReLU
        # TODO(synk): training-mode dropout (Bernoulli mask via pltpu.prng_*) not
        # applied; eval/inference semantics are used.
        h = jnp.dot(x_ref[...], w1_ref[...],
                    preferred_element_type=jnp.float32) + b1_ref[...]
        h = jnp.maximum(h, 0.0)

        # decoder: Linear -> ReLU -> Softmax(dim=1)
        z = jnp.dot(h, w2_ref[...],
                    preferred_element_type=jnp.float32) + b2_ref[...]
        z = jnp.maximum(z, 0.0)
        z = z - jnp.max(z, axis=-1, keepdims=True)
        e = jnp.exp(z)
        if n_padded != n_valid:
            # Exclude zero-padded output lanes from the softmax normalization.
            col = jax.lax.broadcasted_iota(jnp.int32, e.shape, 1)
            e = jnp.where(col < n_valid, e, 0.0)
        denom = jnp.sum(e, axis=-1, keepdims=True)
        o_ref[...] = (e * pl.reciprocal(denom, approx=True)).astype(o_ref.dtype)

    return sae_kernel


def sae_forward(x, w1, b1, w2, b2, *, block_m=256):
    """x: (B, n_taxa); w1: (n_taxa, layer_dim); b1: (1, layer_dim) or (layer_dim,);
       w2: (layer_dim, n_taxa); b2: (1, n_taxa) or (n_taxa,)."""
    B, n_taxa = x.shape
    layer_dim = w1.shape[1]
    dtype = jnp.float32

    # Pad feature dims to full lane width so both matmuls use full MXU lanes / K.
    n_pad = _round_up(n_taxa, 128)
    h_pad = _round_up(layer_dim, 128)

    # Batch tile: as large as block_m allows, multiple of 8 sublanes.
    tm = min(block_m, _round_up(B, 8))
    b_pad = _round_up(B, tm)

    x_p = jnp.zeros((b_pad, n_pad), dtype).at[:B, :n_taxa].set(x.astype(dtype))
    w1_p = jnp.zeros((n_pad, h_pad), dtype).at[:n_taxa, :layer_dim].set(w1.astype(dtype))
    b1_p = jnp.zeros((1, h_pad), dtype).at[:, :layer_dim].set(
        jnp.reshape(b1, (1, layer_dim)).astype(dtype))
    w2_p = jnp.zeros((h_pad, n_pad), dtype).at[:layer_dim, :n_taxa].set(w2.astype(dtype))
    b2_p = jnp.zeros((1, n_pad), dtype).at[:, :n_taxa].set(
        jnp.reshape(b2, (1, n_taxa)).astype(dtype))

    grid = (b_pad // tm,)
    kernel = _make_sae_kernel(n_taxa, n_pad)

    cost = pl.CostEstimate(
        flops=2 * b_pad * (n_pad * h_pad + h_pad * n_pad),
        transcendentals=b_pad * n_pad,  # exp in the softmax
        bytes_accessed=4 * (x_p.size + w1_p.size + b1_p.size
                            + w2_p.size + b2_p.size + b_pad * n_pad),
    )

    out = pl.pallas_call(
        kernel,
        out_shape=jax.ShapeDtypeStruct((b_pad, n_pad), dtype),
        grid_spec=pltpu.PrefetchScalarGridSpec(
            num_scalar_prefetch=0,
            grid=grid,
            in_specs=[
                pl.BlockSpec((tm, n_pad), lambda i: (i, 0)),      # x: tiled over batch
                pl.BlockSpec((n_pad, h_pad), lambda i: (0, 0)),   # w1: resident
                pl.BlockSpec((1, h_pad), lambda i: (0, 0)),       # b1: resident
                pl.BlockSpec((h_pad, n_pad), lambda i: (0, 0)),   # w2: resident
                pl.BlockSpec((1, n_pad), lambda i: (0, 0)),       # b2: resident
            ],
            out_specs=pl.BlockSpec((tm, n_pad), lambda i: (i, 0)),
        ),
        compiler_params=pltpu.CompilerParams(
            dimension_semantics=("parallel",),   # megacore-shard the batch grid (v7x)
        ),
        cost_estimate=cost,
    )(x_p, w1_p, b1_p, w2_p, b2_p)

    return out[:B, :n_taxa]


def sae_reference(x, w1, b1, w2, b2):
    h = jnp.maximum(x @ w1 + jnp.reshape(b1, (1, -1)), 0.0)
    z = jnp.maximum(h @ w2 + jnp.reshape(b2, (1, -1)), 0.0)
    return jax.nn.softmax(z, axis=-1)


if __name__ == "__main__":
    # Shapes consistent with the module: dataset.n_taxa=128, layer_dim=64.
    # Batch 512 with block_m=256 -> a 2-step pipelined grid over the batch axis.
    B, N_TAXA, LAYER_DIM = 512, 128, 64

    key = jax.random.PRNGKey(0)
    kx, k1, k2, k3, k4 = jax.random.split(key, 5)

    x = jax.random.normal(kx, (B, N_TAXA), dtype=jnp.float32)

    # Deterministic parameter init (PyTorch-Linear-style uniform bounds).
    bound1 = 1.0 / jnp.sqrt(N_TAXA)
    w1 = jax.random.uniform(k1, (N_TAXA, LAYER_DIM), jnp.float32, -bound1, bound1)
    b1 = jax.random.uniform(k2, (1, LAYER_DIM), jnp.float32, -bound1, bound1)
    bound2 = 1.0 / jnp.sqrt(LAYER_DIM)
    w2 = jax.random.uniform(k3, (LAYER_DIM, N_TAXA), jnp.float32, -bound2, bound2)
    b2 = jax.random.uniform(k4, (1, N_TAXA), jnp.float32, -bound2, bound2)

    out = jax.block_until_ready(sae_forward(x, w1, b1, w2, b2, block_m=256))

    ref = sae_reference(x, w1, b1, w2, b2)
    assert out.shape == (B, N_TAXA)
    # Tolerance loosened slightly vs. exact f32 because the softmax denominator
    # uses the EUP approximate reciprocal (per perf review).
    assert jnp.allclose(out, ref, atol=2e-3, rtol=2e-3)
    assert jnp.allclose(jnp.sum(out, axis=-1), 1.0, atol=2e-3)

    print("KERNEL_OK")
</pallas_src>

<mosaic_0001>
module attributes {stable_mosaic.version = 11 : i64} {
  func.func @sae_kernel(%arg0: i32, %arg1: memref<256x128xf32, #tpu.memory_space<vmem>>, %arg2: memref<128x128xf32, #tpu.memory_space<vmem>>, %arg3: memref<1x128xf32, #tpu.memory_space<vmem>>, %arg4: memref<128x128xf32, #tpu.memory_space<vmem>>, %arg5: memref<1x128xf32, #tpu.memory_space<vmem>>, %arg6: memref<256x128xf32, #tpu.memory_space<vmem>>) attributes {dimension_semantics = [#tpu.dimension_semantics<parallel>], iteration_bounds = array<i64: 2>, scalar_prefetch = 0 : i64, scratch_operands = 0 : i64, tpu.core_type = #tpu.core_type<tc>, window_params = [{transform_indices = @transform_0, window_bounds = array<i64: 256, 128>}, {pipeline_mode = #tpu.pipeline_mode<synchronous>, transform_indices = @transform_1, window_bounds = array<i64: 128, 128>}, {pipeline_mode = #tpu.pipeline_mode<synchronous>, transform_indices = @transform_2, window_bounds = array<i64: 1, 128>}, {pipeline_mode = #tpu.pipeline_mode<synchronous>, transform_indices = @transform_3, window_bounds = array<i64: 128, 128>}, {pipeline_mode = #tpu.pipeline_mode<synchronous>, transform_indices = @transform_4, window_bounds = array<i64: 1, 128>}, {transform_indices = @transform_5, window_bounds = array<i64: 256, 128>}]} {
    %c0 = arith.constant 0 : index
    %c0_0 = arith.constant 0 : index
    %0 = vector.load %arg1[%c0, %c0_0] : memref<256x128xf32, #tpu.memory_space<vmem>>, vector<256x128xf32>
    %c0_1 = arith.constant 0 : index
    %c0_2 = arith.constant 0 : index
    %1 = vector.load %arg2[%c0_1, %c0_2] : memref<128x128xf32, #tpu.memory_space<vmem>>, vector<128x128xf32>
    %cst = arith.constant dense<0.000000e+00> : vector<256x128xf32>
    %2 = tpu.matmul %0, %1, %cst {dimension_numbers = #tpu.dot_dimension_numbers<[1], [0], [0], [1], [0, 0, 1, 1], [], []>} : vector<256x128xf32>, vector<128x128xf32>, vector<256x128xf32> -> vector<256x128xf32>
    %c0_3 = arith.constant 0 : index
    %c0_4 = arith.constant 0 : index
    %3 = vector.load %arg3[%c0_3, %c0_4] : memref<1x128xf32, #tpu.memory_space<vmem>>, vector<1x128xf32>
    %4 = vector.broadcast %3 : vector<1x128xf32> to vector<256x128xf32>
    %5 = arith.addf %2, %4 : vector<256x128xf32>
    %cst_5 = arith.constant 0.000000e+00 : f32
    %6 = vector.broadcast %cst_5 : f32 to vector<256x128xf32>
    %7 = arith.maximumf %5, %6 : vector<256x128xf32>
    %c0_6 = arith.constant 0 : index
    %c0_7 = arith.constant 0 : index
    %8 = vector.load %arg4[%c0_6, %c0_7] : memref<128x128xf32, #tpu.memory_space<vmem>>, vector<128x128xf32>
    %cst_8 = arith.constant dense<0.000000e+00> : vector<256x128xf32>
    %9 = tpu.matmul %7, %8, %cst_8 {dimension_numbers = #tpu.dot_dimension_numbers<[1], [0], [0], [1], [0, 0, 1, 1], [], []>} : vector<256x128xf32>, vector<128x128xf32>, vector<256x128xf32> -> vector<256x128xf32>
    %c0_9 = arith.constant 0 : index
    %c0_10 = arith.constant 0 : index
    %10 = vector.load %arg5[%c0_9, %c0_10] : memref<1x128xf32, #tpu.memory_space<vmem>>, vector<1x128xf32>
    %11 = vector.broadcast %10 : vector<1x128xf32> to vector<256x128xf32>
    %12 = arith.addf %9, %11 : vector<256x128xf32>
    %cst_11 = arith.constant 0.000000e+00 : f32
    %13 = vector.broadcast %cst_11 : f32 to vector<256x128xf32>
    %14 = arith.maximumf %12, %13 : vector<256x128xf32>
    %cst_12 = arith.constant dense<0xFF800000> : vector<256xf32>
    %15 = vector.multi_reduction <maximumf>, %14, %cst_12 [1] : vector<256x128xf32> to vector<256xf32>
    %16 = vector.shape_cast %15 : vector<256xf32> to vector<256x1xf32>
    %17 = vector.broadcast %16 : vector<256x1xf32> to vector<256x128xf32>
    %18 = arith.subf %14, %17 : vector<256x128xf32>
    %19 = math.exp %18 : vector<256x128xf32>
    %cst_13 = arith.constant dense<0.000000e+00> : vector<256xf32>
    %20 = vector.multi_reduction <add>, %19, %cst_13 [1] : vector<256x128xf32> to vector<256xf32>
    %21 = vector.shape_cast %20 : vector<256xf32> to vector<256x1xf32>
    %22 = tpu.reciprocal %21 {approx = true} : vector<256x1xf32> -> vector<256x1xf32>
    %23 = vector.broadcast %22 : vector<256x1xf32> to vector<256x128xf32>
    %24 = arith.mulf %19, %23 : vector<256x128xf32>
    %c0_14 = arith.constant 0 : index
    %c0_15 = arith.constant 0 : index
    %25 = vector.load %arg6[%c0_14, %c0_15] : memref<256x128xf32, #tpu.memory_space<vmem>>, vector<256x128xf32>
    tpu.vector_store %arg6[%c0_14, %c0_15], %24 {strides = array<i32>} : memref<256x128xf32, #tpu.memory_space<vmem>>, vector<256x128xf32>,
    return
  }
  func.func @transform_0(%arg0: i32) -> (i32, i32) {
    %c0_i32 = arith.constant 0 : i32
    %c0_i32_0 = arith.constant 0 : i32
    return %arg0, %c0_i32 : i32, i32
  }
  func.func @transform_1(%arg0: i32) -> (i32, i32) {
    %c0_i32 = arith.constant 0 : i32
    %c0_i32_0 = arith.constant 0 : i32
    %c0_i32_1 = arith.constant 0 : i32
    return %c0_i32, %c0_i32_0 : i32, i32
  }
  func.func @transform_2(%arg0: i32) -> (i32, i32) {
    %c0_i32 = arith.constant 0 : i32
    %c0_i32_0 = arith.constant 0 : i32
    %c0_i32_1 = arith.constant 0 : i32
    return %c0_i32, %c0_i32_0 : i32, i32
  }
  func.func @transform_3(%arg0: i32) -> (i32, i32) {
    %c0_i32 = arith.constant 0 : i32
    %c0_i32_0 = arith.constant 0 : i32
    %c0_i32_1 = arith.constant 0 : i32
    return %c0_i32, %c0_i32_0 : i32, i32
  }
  func.func @transform_4(%arg0: i32) -> (i32, i32) {
    %c0_i32 = arith.constant 0 : i32
    %c0_i32_0 = arith.constant 0 : i32
    %c0_i32_1 = arith.constant 0 : i32
    return %c0_i32, %c0_i32_0 : i32, i32
  }
  func.func @transform_5(%arg0: i32) -> (i32, i32) {
    %c0_i32 = arith.constant 0 : i32
    %c0_i32_0 = arith.constant 0 : i32
    return %arg0, %c0_i32 : i32, i32
  }
}

</mosaic_0001>

<llo_original>
// kernel: tpu_custom_call.1
$region0: #{tpu_custom_call.1}
  #allocation0 [shape = 'u32[]', space=smem, size = 0x4, offset = 0x4, fixed_abs, tag = 'smem constant byte address 0x4 - core index']
  #allocation1 [shape = 'u32[72,128]{1,0:T(1,128)}', space=vmem, size = 0x9000, scoped, tag = 'internal scratch']
  %s0 = inlined_call_operand.hbm [shape: f32[512,128], index: 0, kind: input, shape index: {}]
  %s1 = inlined_call_operand.hbm [shape: f32[128,128], index: 1, kind: input, shape index: {}]
  %s2 = inlined_call_operand.vmem [shape: f32[1,128], index: 2, kind: input, shape index: {}]
  %s3 = inlined_call_operand.hbm [shape: f32[128,128], index: 3, kind: input, shape index: {}]
  %s4 = inlined_call_operand.vmem [shape: f32[1,128], index: 4, kind: input, shape index: {}]
  %s5 = inlined_call_operand.hbm [shape: f32[512,128], index: 5, kind: output, shape index: {}]
  %s6 = sld [smem:[#allocation0]]
  $region65: #{tpu_custom_call.1} parent=0
    _
  %s8 = ssub.s32 1, %s6
  %s9 = scalar_select 0, %s8, %s6
  $region1: #{tpu_custom_call.1} parent=0
    #allocation2 [shape = 'u8[262144]{0}', space=vmem, size = 0x40000, scoped, tag = 'input window, operand 0']
    #allocation3 [shape = 's32[2]{0}', space=sflag, size = 0x8, scoped, tag = 'scoped memory for tpu_custom_call.1']
    #allocation4 [shape = 's32[2]{0}', space=sflag, size = 0x8, scoped, tag = 'scoped memory for tpu_custom_call.1']
    #allocation5 [shape = 'u8[65536]{0}', space=vmem, size = 0x10000, scoped, tag = 'input window, operand 1, single buffered']
    #allocation6 [shape = 's32[1]{0}', space=sflag, size = 0x4, scoped, tag = 'scoped memory for tpu_custom_call.1']
    #allocation7 [shape = 'u8[65536]{0}', space=vmem, size = 0x10000, scoped, tag = 'input window, operand 3, single buffered']
    #allocation8 [shape = 'u8[262144]{0}', space=vmem, size = 0x40000, scoped, tag = 'output window, operand 0']
    %10 = vsyncpa [#allocation3], 0
    %s11 = scalar_lea.sflag [#allocation3], 1
    %12 = vsyncpa %s11, 0
    %13 = vsyncpa [#allocation6], 0
    %14 = vsyncpa [#allocation4], 0
    %s15 = scalar_lea.sflag [#allocation4], 1
    %16 = vsyncpa %s15, 0
    loop: start=0, step=1, limit=4
    $region2: #{tpu_custom_call.1} parent=1 // loop_pre_header
      _
    $region3: #{tpu_custom_call.1} parent=1 // loop_header
      %s18 = sphi 0, %s22
      %p19 = scmp.ge.s32.totalorder %s18, 4
      %s28 = sphi 0, %s30
      %s31 = sphi 0, %s28
      %s32 = sphi 0, %s31
      %s48 = sphi 0, %s32
      %s52 = sphi 0, %s52
      %s54 = sphi 0, %s52
      %s55 = sphi 0, %s54
      %s69 = sphi 0, %s55
      %s73 = sphi 0, %s73
      %s75 = sphi 0, %s73
      %s76 = sphi 0, %s75
      %s90 = sphi 0, %s76
      %s94 = sphi 0, %s94
      %s96 = sphi 0, %s94
      %s97 = sphi 0, %s96
      %s111 = sphi 0, %s97
      %s115 = sphi 0, %s115
      %s117 = sphi 0, %s115
      %s118 = sphi 0, %s117
      %s132 = sphi 0, %s118
      %s138 = sphi 0, %s140
      %s141 = sphi 0, %s138
      %s142 = sphi 0, %s141
      %s158 = sphi 0, %s142
    $region4: #{tpu_custom_call.1} parent=1 // loop_header_branch
      %21 = sbr.rel (%p19) target = $region8
    $region5: #{tpu_custom_call.1} parent=1 // loop_body
      %s23 = ssub.s32 %s18, 1
      %s24 = ssub.s32 %s18, 2
      %s25 = sadd.s32 %s18, 1
      %s26 = ssub.s32 %s18, %s25
      %p27 = scmp.eq.s32.totalorder %s26, 0
      %s29 = sadd.s32 %s28, 1
      %s30 = scalar_select %p27, %s28, %s29
      %p33 = pneg %p27
      %p34 = scmp.eq.s32.totalorder %s18, 1
      %p35 = por %p33, %p34
      %p36 = scmp.ne.s32.totalorder %s28, %s31
      %p37 = scmp.eq.s32.totalorder %s18, 0
      %p38 = por %p36, %p37
      %p39 = scmp.ne.s32.totalorder %s28, %s31
      %p40 = scmp.eq.s32.totalorder %s23, 1
      %p41 = por %p39, %p40
      %p42 = scmp.ne.s32.totalorder %s31, %s32
      %p43 = scmp.eq.s32.totalorder %s23, 0
      %p44 = por %p42, %p43
      %p45 = scmp.ne.s32.totalorder %s31, %s32
      %p46 = scmp.eq.s32.totalorder %s24, 1
      %p47 = por %p45, %p46
      %p49 = scmp.ne.s32.totalorder %s32, %s48
      %p50 = scmp.eq.s32.totalorder %s24, 0
      %p51 = por %p49, %p50
      %s53 = sadd.s32 %s52, 1
      %p56 = scmp.eq.s32.totalorder %s18, 1
      %p57 = scmp.ne.s32.totalorder %s52, %s54
      %p58 = scmp.eq.s32.totalorder %s18, 0
      %p59 = por %p57, %p58
      %p60 = scmp.ne.s32.totalorder %s52, %s54
      %p61 = scmp.eq.s32.totalorder %s23, 1
      %p62 = por %p60, %p61
      %p63 = scmp.ne.s32.totalorder %s54, %s55
      %p64 = scmp.eq.s32.totalorder %s23, 0
      %p65 = por %p63, %p64
      %p66 = scmp.ne.s32.totalorder %s54, %s55
      %p67 = scmp.eq.s32.totalorder %s24, 1
      %p68 = por %p66, %p67
      %p70 = scmp.ne.s32.totalorder %s55, %s69
      %p71 = scmp.eq.s32.totalorder %s24, 0
      %p72 = por %p70, %p71
      %s74 = sadd.s32 %s73, 1
      %p77 = scmp.eq.s32.totalorder %s18, 1
      %p78 = scmp.ne.s32.totalorder %s73, %s75
      %p79 = scmp.eq.s32.totalorder %s18, 0
      %p80 = por %p78, %p79
      %p81 = scmp.ne.s32.totalorder %s73, %s75
      %p82 = scmp.eq.s32.totalorder %s23, 1
      %p83 = por %p81, %p82
      %p84 = scmp.ne.s32.totalorder %s75, %s76
      %p85 = scmp.eq.s32.totalorder %s23, 0
      %p86 = por %p84, %p85
      %p87 = scmp.ne.s32.totalorder %s75, %s76
      %p88 = scmp.eq.s32.totalorder %s24, 1
      %p89 = por %p87, %p88
      %p91 = scmp.ne.s32.totalorder %s76, %s90
      %p92 = scmp.eq.s32.totalorder %s24, 0
      %p93 = por %p91, %p92
      %s95 = sadd.s32 %s94, 1
      %p98 = scmp.eq.s32.totalorder %s18, 1
      %p99 = scmp.ne.s32.totalorder %s94, %s96
      %p100 = scmp.eq.s32.totalorder %s18, 0
      %p101 = por %p99, %p100
      %p102 = scmp.ne.s32.totalorder %s94, %s96
      %p103 = scmp.eq.s32.totalorder %s23, 1
      %p104 = por %p102, %p103
      %p105 = scmp.ne.s32.totalorder %s96, %s97
      %p106 = scmp.eq.s32.totalorder %s23, 0
      %p107 = por %p105, %p106
      %p108 = scmp.ne.s32.totalorder %s96, %s97
      %p109 = scmp.eq.s32.totalorder %s24, 1
      %p110 = por %p108, %p109
      %p112 = scmp.ne.s32.totalorder %s97, %s111
      %p113 = scmp.eq.s32.totalorder %s24, 0
      %p114 = por %p112, %p113
      %s116 = sadd.s32 %s115, 1
      %p119 = scmp.eq.s32.totalorder %s18, 1
      %p120 = scmp.ne.s32.totalorder %s115, %s117
      %p121 = scmp.eq.s32.totalorder %s18, 0
      %p122 = por %p120, %p121
      %p123 = scmp.ne.s32.totalorder %s115, %s117
      %p124 = scmp.eq.s32.totalorder %s23, 1
      %p125 = por %p123, %p124
      %p126 = scmp.ne.s32.totalorder %s117, %s118
      %p127 = scmp.eq.s32.totalorder %s23, 0
      %p128 = por %p126, %p127
      %p129 = scmp.ne.s32.totalorder %s117, %s118
      %p130 = scmp.eq.s32.totalorder %s24, 1
      %p131 = por %p129, %p130
      %p133 = scmp.ne.s32.totalorder %s118, %s132
      %p134 = scmp.eq.s32.totalorder %s24, 0
      %p135 = por %p133, %p134
      %s136 = ssub.s32 %s18, %s25
      %p137 = scmp.eq.s32.totalorder %s136, 0
      %s139 = sadd.s32 %s138, 1
      %s140 = scalar_select %p137, %s138, %s139
      %p143 = pneg %p137
      %p144 = scmp.eq.s32.totalorder %s18, 1
      %p145 = por %p143, %p144
      %p146 = scmp.ne.s32.totalorder %s138, %s141
      %p147 = scmp.eq.s32.totalorder %s18, 0
      %p148 = por %p146, %p147
      %p149 = scmp.ne.s32.totalorder %s138, %s141
      %p150 = scmp.eq.s32.totalorder %s23, 1
      %p151 = por %p149, %p150
      %p152 = scmp.ne.s32.totalorder %s141, %s142
      %p153 = scmp.eq.s32.totalorder %s23, 0
      %p154 = por %p152, %p153
      %p155 = scmp.ne.s32.totalorder %s141, %s142
      %p156 = scmp.eq.s32.totalorder %s24, 1
      %p157 = por %p155, %p156
      %p159 = scmp.ne.s32.totalorder %s142, %s158
      %p160 = scmp.eq.s32.totalorder %s24, 0
      %p161 = por %p159, %p160
      %p162 = scmp.le.s32.totalorder 1, %s18
      %p163 = scmp.lt.s32.totalorder %s18, 3
      %p164 = pnand %p162, %p163
      %p165 = pneg %p164
      // Predicated region
      $region9: #{tpu_custom_call.1} parent=5 // pred_check
        _
      $region10: #{tpu_custom_call.1} parent=5 // pred_check_branch
        %167 = sbr.rel (%p164) target = $region12
      $region11: #{tpu_custom_call.1} parent=5 // pred_region
        %s168 = ssub.s32 %s18, 1
        // Predicated region
        $region13: #{tpu_custom_call.1} parent=11 // pred_check
          %p169 = pneg %p65
        $region14: #{tpu_custom_call.1} parent=11 // pred_check_branch
          %171 = sbr.rel (%p169) target = $region16
        $region15: #{tpu_custom_call.1} parent=11 // pred_region
          %173 = vsyncadd [#allocation6], 0
          %s174 = sshll.u32 %s1, 4
          %s175 = int_to_ptr.hbm [resolvable:$true] %s174
          %s176 = sshll.u32 [#allocation5], 4
          %s177 = int_to_ptr.vmem [resolvable:$true] %s176
          %182 = dma.hbm_to_vmem [thread:$0]  %s175, 2048, %s177, [#allocation6], 128, 128, 8
        $region16: #{tpu_custom_call.1} parent=11 // pred_fallthru
          _
        // Predicated region
        $region17: #{tpu_custom_call.1} parent=11 // pred_check
          %p183 = pneg %p86
        $region18: #{tpu_custom_call.1} parent=11 // pred_check_branch
          %185 = sbr.rel (%p183) target = $region20
        $region19: #{tpu_custom_call.1} parent=11 // pred_region
          _
        $region20: #{tpu_custom_call.1} parent=11 // pred_fallthru
          _
        // Predicated region
        $region21: #{tpu_custom_call.1} parent=11 // pred_check
          %p186 = pneg %p107
        $region22: #{tpu_custom_call.1} parent=11 // pred_check_branch
          %188 = sbr.rel (%p186) target = $region24
        $region23: #{tpu_custom_call.1} parent=11 // pred_region
          %190 = vsyncadd [#allocation6], 0
          %s191 = sshll.u32 %s3, 4
          %s192 = int_to_ptr.hbm [resolvable:$true] %s191
          %s193 = sshll.u32 [#allocation7], 4
          %s194 = int_to_ptr.vmem [resolvable:$true] %s193
          %199 = dma.hbm_to_vmem [thread:$0]  %s192, 2048, %s194, [#allocation6], 128, 128, 8
        $region24: #{tpu_custom_call.1} parent=11 // pred_fallthru
          _
        // Predicated region
        $region25: #{tpu_custom_call.1} parent=11 // pred_check
          %p200 = pneg %p128
        $region26: #{tpu_custom_call.1} parent=11 // pred_check_branch
          %202 = sbr.rel (%p200) target = $region28
        $region27: #{tpu_custom_call.1} parent=11 // pred_region
          _
        $region28: #{tpu_custom_call.1} parent=11 // pred_fallthru
          _
      $region12: #{tpu_custom_call.1} parent=5 // pred_fallthru
        _
      %p203 = scmp.lt.s32.totalorder %s18, 2
      // Predicated region
      $region29: #{tpu_custom_call.1} parent=5 // pred_check
        %p204 = pneg %p203
      $region30: #{tpu_custom_call.1} parent=5 // pred_check_branch
        %206 = sbr.rel (%p204) target = $region32
      $region31: #{tpu_custom_call.1} parent=5 // pred_region
        // Predicated region
        $region33: #{tpu_custom_call.1} parent=31 // pred_check
          %p207 = pneg %p38
        $region34: #{tpu_custom_call.1} parent=31 // pred_check_branch
          %209 = sbr.rel (%p207) target = $region36
        $region35: #{tpu_custom_call.1} parent=31 // pred_region
          %s210 = sand.u32 %s28, 1
          %s211 = scalar_lea.sflag [#allocation3], %s210
          %s212 = sand.u32 %s28, 1
          %s213 = smul.addr %s212, 256
          %s214 = scalar_lea.vmem [#allocation2], %s213
          %s215 = smul.u32 32, %s18
          %217 = vsyncadd %s211, 0
          %s218 = smul.addr %s215, 8
          %s219 = scalar_lea.hbm %s0, %s218
          %s220 = sshll.u32 %s219, 4
          %s221 = int_to_ptr.hbm [resolvable:$true] %s220
          %s222 = sshll.u32 %s214, 4
          %s223 = int_to_ptr.vmem [resolvable:$true] %s222
          %228 = dma.hbm_to_vmem [thread:$0]  %s221, 4096, %s223, %s211, 128, 128, 8
        $region36: #{tpu_custom_call.1} parent=31 // pred_fallthru
          _
      $region32: #{tpu_custom_call.1} parent=5 // pred_fallthru
        _
      %p229 = scmp.le.s32.totalorder 1, %s18
      %p230 = scmp.lt.s32.totalorder %s18, 3
      %p231 = pnand %p229, %p230
      %p232 = pneg %p231
      // Predicated region
      $region37: #{tpu_custom_call.1} parent=5 // pred_check
        _
      $region38: #{tpu_custom_call.1} parent=5 // pred_check_branch
        %234 = sbr.rel (%p231) target = $region40
      $region39: #{tpu_custom_call.1} parent=5 // pred_region
        %s235 = ssub.s32 %s18, 1
        %s236 = sand.u32 %s31, 1
        %s237 = scalar_lea.sflag [#allocation3], %s236
        %s238 = sand.u32 %s31, 1
        %s239 = smul.addr %s238, 256
        %s240 = scalar_lea.vmem [#allocation2], %s239
        // Predicated region
        $region41: #{tpu_custom_call.1} parent=39 // pred_check
          %p241 = pneg %p44
        $region42: #{tpu_custom_call.1} parent=39 // pred_check_branch
          %243 = sbr.rel (%p241) target = $region44
        $region43: #{tpu_custom_call.1} parent=39 // pred_region
          %245 = dma.done %s237, 4096
        $region44: #{tpu_custom_call.1} parent=39 // pred_fallthru
          _
        // Predicated region
        $region45: #{tpu_custom_call.1} parent=39 // pred_check
          %p246 = pneg %p65
        $region46: #{tpu_custom_call.1} parent=39 // pred_check_branch
          %248 = sbr.rel (%p246) target = $region48
        $region47: #{tpu_custom_call.1} parent=39 // pred_region
          %250 = dma.done [#allocation6], 2048
        $region48: #{tpu_custom_call.1} parent=39 // pred_fallthru
          _
        // Predicated region
        $region49: #{tpu_custom_call.1} parent=39 // pred_check
          %p251 = pneg %p107
        $region50: #{tpu_custom_call.1} parent=39 // pred_check_branch
          %253 = sbr.rel (%p251) target = $region52
        $region51: #{tpu_custom_call.1} parent=39 // pred_region
          %255 = dma.done [#allocation6], 2048
        $region52: #{tpu_custom_call.1} parent=39 // pred_fallthru
          _
        %s256 = sand.u32 %s31, 1
        %s257 = scalar_lea.sflag [#allocation3], %s256
        %s258 = sand.u32 %s31, 1
        %s259 = smul.addr %s258, 256
        %s260 = scalar_lea.vmem [#allocation2], %s259
        %p261 = pneg %p44
        %p262 = pneg %p41
        %p263 = pneg %p65
        %p264 = pneg %p62
        %p265 = pneg %p86
        %p266 = pneg %p83
        %p267 = pneg %p107
        %p268 = pneg %p104
        %p269 = pneg %p128
        %p270 = pneg %p125
        %p271 = pneg %p154
        %p272 = pneg %p151
        %s273 = sand.u32 %s141, 1
        %s274 = scalar_lea.sflag [#allocation4], %s273
        %s275 = sand.u32 %s141, 1
        %s276 = smul.addr %s275, 256
        %s277 = scalar_lea.vmem [#allocation8], %s276
        %s278 = smul.u32 32, %s23
        %s279 = smul.u32 32, %s23
        %v280 = vld [vmem:[%s240] sm:$0xff]
        %v281 = vld [vmem:[%s240 + $0x8] sm:$0xff]
        %v282 = vld [vmem:[%s240 + $0x10] sm:$0xff]
        %v283 = vld [vmem:[%s240 + $0x18] sm:$0xff]
        %v284 = vld [vmem:[%s240 + $0x20] sm:$0xff]
        %v285 = vld [vmem:[%s240 + $0x28] sm:$0xff]
        %v286 = vld [vmem:[%s240 + $0x30] sm:$0xff]
        %v287 = vld [vmem:[%s240 + $0x38] sm:$0xff]
        %v288 = vld [vmem:[%s240 + $0x40] sm:$0xff]
        %v289 = vld [vmem:[%s240 + $0x48] sm:$0xff]
        %v290 = vld [vmem:[%s240 + $0x50] sm:$0xff]
        %v291 = vld [vmem:[%s240 + $0x58] sm:$0xff]
        %v292 = vld [vmem:[%s240 + $0x60] sm:$0xff]
        %v293 = vld [vmem:[%s240 + $0x68] sm:$0xff]
        %v294 = vld [vmem:[%s240 + $0x70] sm:$0xff]
        %v295 = vld [vmem:[%s240 + $0x78] sm:$0xff]
        %v296 = vld [vmem:[%s240 + $0x80] sm:$0xff]
        %v297 = vld [vmem:[%s240 + $0x88] sm:$0xff]
        %v298 = vld [vmem:[%s240 + $0x90] sm:$0xff]
        %v299 = vld [vmem:[%s240 + $0x98] sm:$0xff]
        %v300 = vld [vmem:[%s240 + $0xa0] sm:$0xff]
        %v301 = vld [vmem:[%s240 + $0xa8] sm:$0xff]
        %v302 = vld [vmem:[%s240 + $0xb0] sm:$0xff]
        %v303 = vld [vmem:[%s240 + $0xb8] sm:$0xff]
        %v304 = vld [vmem:[%s240 + $0xc0] sm:$0xff]
        %v305 = vld [vmem:[%s240 + $0xc8] sm:$0xff]
        %v306 = vld [vmem:[%s240 + $0xd0] sm:$0xff]
        %v307 = vld [vmem:[%s240 + $0xd8] sm:$0xff]
        %v308 = vld [vmem:[%s240 + $0xe0] sm:$0xff]
        %v309 = vld [vmem:[%s240 + $0xe8] sm:$0xff]
        %v310 = vld [vmem:[%s240 + $0xf0] sm:$0xff]
        %v311 = vld [vmem:[%s240 + $0xf8] sm:$0xff]
        %v312 = vld [vmem:[#allocation5] sm:$0xff]
        %v313 = vld [vmem:[#allocation5 + $0x8] sm:$0xff]
        %v314 = vld [vmem:[#allocation5 + $0x10] sm:$0xff]
        %v315 = vld [vmem:[#allocation5 + $0x18] sm:$0xff]
        %v316 = vld [vmem:[#allocation5 + $0x20] sm:$0xff]
        %v317 = vld [vmem:[#allocation5 + $0x28] sm:$0xff]
        %v318 = vld [vmem:[#allocation5 + $0x30] sm:$0xff]
        %v319 = vld [vmem:[#allocation5 + $0x38] sm:$0xff]
        %v320 = vld [vmem:[#allocation5 + $0x40] sm:$0xff]
        %v321 = vld [vmem:[#allocation5 + $0x48] sm:$0xff]
        %v322 = vld [vmem:[#allocation5 + $0x50] sm:$0xff]
        %v323 = vld [vmem:[#allocation5 + $0x58] sm:$0xff]
        %v324 = vld [vmem:[#allocation5 + $0x60] sm:$0xff]
        %v325 = vld [vmem:[#allocation5 + $0x68] sm:$0xff]
        %v326 = vld [vmem:[#allocation5 + $0x70] sm:$0xff]
        %v327 = vld [vmem:[#allocation5 + $0x78] sm:$0xff]
        %v328 = vld [vmem:[%s2] sm:$0x1]
        %v330 = vperm.slane %v328, 0
        %332 = vmatpush.msra.mxu0 %v327
        %333 = vmatpush.msra.mxu0 %v326
        %334 = vmatpush.msra.mxu0 %v325
        %335 = vmatpush.msra.mxu0 %v324
        %336 = vmatpush.msra.mxu0 %v323
        %337 = vmatpush.msra.mxu0 %v322
        %338 = vmatpush.msra.mxu0 %v321
        %339 = vmatpush.msra.mxu0 %v320
        %340 = vmatpush.msra.mxu0 %v319
        %341 = vmatpush.msra.mxu0 %v318
        %342 = vmatpush.msra.mxu0 %v317
        %343 = vmatpush.msra.mxu0 %v316
        %344 = vmatpush.msra.mxu0 %v315
        %345 = vmatpush.msra.mxu0 %v314
        %346 = vmatpush.msra.mxu0 %v313
        %347 = vmatpush.msra.mxu0 %v312
        %348 = vmatmul.f32.gmra.mxu0 %v280
        %v349 = vpop.f32.mrf.mxu0
        %v350 = vadd.f32 %v330, %v349
        %351 = vmatmul.f32.gmra.mxu0 %v281
        %v352 = vpop.f32.mrf.mxu0
        %v353 = vadd.f32 %v330, %v352
        %354 = vmatmul.f32.gmra.mxu0 %v282
        %v355 = vpop.f32.mrf.mxu0
        %v356 = vadd.f32 %v330, %v355
        %357 = vmatmul.f32.gmra.mxu0 %v283
        %v358 = vpop.f32.mrf.mxu0
        %v359 = vadd.f32 %v330, %v358
        %360 = vmatmul.f32.gmra.mxu0 %v284
        %v361 = vpop.f32.mrf.mxu0
        %v362 = vadd.f32 %v330, %v361
        %363 = vmatmul.f32.gmra.mxu0 %v285
        %v364 = vpop.f32.mrf.mxu0
        %v365 = vadd.f32 %v330, %v364
        %366 = vmatmul.f32.gmra.mxu0 %v286
        %v367 = vpop.f32.mrf.mxu0
        %v368 = vadd.f32 %v330, %v367
        %369 = vmatmul.f32.gmra.mxu0 %v287
        %v370 = vpop.f32.mrf.mxu0
        %v371 = vadd.f32 %v330, %v370
        %372 = vmatmul.f32.gmra.mxu0 %v288
        %v373 = vpop.f32.mrf.mxu0
        %v374 = vadd.f32 %v330, %v373
        %375 = vmatmul.f32.gmra.mxu0 %v289
        %v376 = vpop.f32.mrf.mxu0
        %v377 = vadd.f32 %v330, %v376
        %378 = vmatmul.f32.gmra.mxu0 %v290
        %v379 = vpop.f32.mrf.mxu0
        %v380 = vadd.f32 %v330, %v379
        %381 = vmatmul.f32.gmra.mxu0 %v291
        %v382 = vpop.f32.mrf.mxu0
        %v383 = vadd.f32 %v330, %v382
        %384 = vmatmul.f32.gmra.mxu0 %v292
        %v385 = vpop.f32.mrf.mxu0
        %v386 = vadd.f32 %v330, %v385
        %387 = vmatmul.f32.gmra.mxu0 %v293
        %v388 = vpop.f32.mrf.mxu0
        %v389 = vadd.f32 %v330, %v388
        %390 = vmatmul.f32.gmra.mxu0 %v294
        %v391 = vpop.f32.mrf.mxu0
        %v392 = vadd.f32 %v330, %v391
        %393 = vmatmul.f32.gmra.mxu0 %v295
        %v394 = vpop.f32.mrf.mxu0
        %v395 = vadd.f32 %v330, %v394
        %396 = vmatmul.f32.gmra.mxu0 %v296
        %v397 = vpop.f32.mrf.mxu0
        %v398 = vadd.f32 %v330, %v397
        %399 = vmatmul.f32.gmra.mxu0 %v297
        %v400 = vpop.f32.mrf.mxu0
        %v401 = vadd.f32 %v330, %v400
        %402 = vmatmul.f32.gmra.mxu0 %v298
        %v403 = vpop.f32.mrf.mxu0
        %v404 = vadd.f32 %v330, %v403
        %405 = vmatmul.f32.gmra.mxu0 %v299
        %v406 = vpop.f32.mrf.mxu0
        %v407 = vadd.f32 %v330, %v406
        %408 = vmatmul.f32.gmra.mxu0 %v300
        %v409 = vpop.f32.mrf.mxu0
        %v410 = vadd.f32 %v330, %v409
        %411 = vmatmul.f32.gmra.mxu0 %v301
        %v412 = vpop.f32.mrf.mxu0
        %v413 = vadd.f32 %v330, %v412
        %414 = vmatmul.f32.gmra.mxu0 %v302
        %v415 = vpop.f32.mrf.mxu0
        %v416 = vadd.f32 %v330, %v415
        %417 = vmatmul.f32.gmra.mxu0 %v303
        %v418 = vpop.f32.mrf.mxu0
        %v419 = vadd.f32 %v330, %v418
        %420 = vmatmul.f32.gmra.mxu0 %v304
        %v421 = vpop.f32.mrf.mxu0
        %v422 = vadd.f32 %v330, %v421
        %423 = vmatmul.f32.gmra.mxu0 %v305
        %v424 = vpop.f32.mrf.mxu0
        %v425 = vadd.f32 %v330, %v424
        %426 = vmatmul.f32.gmra.mxu0 %v306
        %v427 = vpop.f32.mrf.mxu0
        %v428 = vadd.f32 %v330, %v427
        %429 = vmatmul.f32.gmra.mxu0 %v307
        %v430 = vpop.f32.mrf.mxu0
        %v431 = vadd.f32 %v330, %v430
        %432 = vmatmul.f32.gmra.mxu0 %v308
        %v433 = vpop.f32.mrf.mxu0
        %v434 = vadd.f32 %v330, %v433
        %435 = vmatmul.f32.gmra.mxu0 %v309
        %v436 = vpop.f32.mrf.mxu0
        %v437 = vadd.f32 %v330, %v436
        %438 = vmatmul.f32.gmra.mxu0 %v310
        %v439 = vpop.f32.mrf.mxu0
        %v440 = vadd.f32 %v330, %v439
        %441 = vmatmul.f32.gmra.mxu0 %v311
        %v442 = vpop.f32.mrf.mxu0
        %v443 = vadd.f32 %v330, %v442
        %444 = vdwg.mxu0
        %v445 = vmax.f32 %v350, 0.0
        %v446 = vmax.f32 %v353, 0.0
        %v447 = vmax.f32 %v356, 0.0
        %v448 = vmax.f32 %v359, 0.0
        %v449 = vmax.f32 %v362, 0.0
        %v450 = vmax.f32 %v365, 0.0
        %v451 = vmax.f32 %v368, 0.0
        %v452 = vmax.f32 %v371, 0.0
        %v453 = vmax.f32 %v374, 0.0
        %v454 = vmax.f32 %v377, 0.0
        %v455 = vmax.f32 %v380, 0.0
        %v456 = vmax.f32 %v383, 0.0
        %v457 = vmax.f32 %v386, 0.0
        %v458 = vmax.f32 %v389, 0.0
        %v459 = vmax.f32 %v392, 0.0
        %v460 = vmax.f32 %v395, 0.0
        %v461 = vmax.f32 %v398, 0.0
        %v462 = vmax.f32 %v401, 0.0
        %v463 = vmax.f32 %v404, 0.0
        %v464 = vmax.f32 %v407, 0.0
        %v465 = vmax.f32 %v410, 0.0
        %v466 = vmax.f32 %v413, 0.0
        %v467 = vmax.f32 %v416, 0.0
        %v468 = vmax.f32 %v419, 0.0
        %v469 = vmax.f32 %v422, 0.0
        %v470 = vmax.f32 %v425, 0.0
        %v471 = vmax.f32 %v428, 0.0
        %v472 = vmax.f32 %v431, 0.0
        %v473 = vmax.f32 %v434, 0.0
        %v474 = vmax.f32 %v437, 0.0
        %v475 = vmax.f32 %v440, 0.0
        %v476 = vmax.f32 %v443, 0.0
        %v477 = vld [vmem:[#allocation7] sm:$0xff]
        %v478 = vld [vmem:[#allocation7 + $0x8] sm:$0xff]
        %v479 = vld [vmem:[#allocation7 + $0x10] sm:$0xff]
        %v480 = vld [vmem:[#allocation7 + $0x18] sm:$0xff]
        %v481 = vld [vmem:[#allocation7 + $0x20] sm:$0xff]
        %v482 = vld [vmem:[#allocation7 + $0x28] sm:$0xff]
        %v483 = vld [vmem:[#allocation7 + $0x30] sm:$0xff]
        %v484 = vld [vmem:[#allocation7 + $0x38] sm:$0xff]
        %v485 = vld [vmem:[#allocation7 + $0x40] sm:$0xff]
        %v486 = vld [vmem:[#allocation7 + $0x48] sm:$0xff]
        %v487 = vld [vmem:[#allocation7 + $0x50] sm:$0xff]
        %v488 = vld [vmem:[#allocation7 + $0x58] sm:$0xff]
        %v489 = vld [vmem:[#allocation7 + $0x60] sm:$0xff]
        %v490 = vld [vmem:[#allocation7 + $0x68] sm:$0xff]
        %v491 = vld [vmem:[#allocation7 + $0x70] sm:$0xff]
        %v492 = vld [vmem:[#allocation7 + $0x78] sm:$0xff]
        %v493 = vld [vmem:[%s4] sm:$0x1]
        %v495 = vperm.slane %v493, 0
        %497 = vmatpush.msra.mxu0 %v492
        %498 = vmatpush.msra.mxu0 %v491
        %499 = vmatpush.msra.mxu0 %v490
        %500 = vmatpush.msra.mxu0 %v489
        %501 = vmatpush.msra.mxu0 %v488
        %502 = vmatpush.msra.mxu0 %v487
        %503 = vmatpush.msra.mxu0 %v486
        %504 = vmatpush.msra.mxu0 %v485
        %505 = vmatpush.msra.mxu0 %v484
        %506 = vmatpush.msra.mxu0 %v483
        %507 = vmatpush.msra.mxu0 %v482
        %508 = vmatpush.msra.mxu0 %v481
        %509 = vmatpush.msra.mxu0 %v480
        %510 = vmatpush.msra.mxu0 %v479
        %511 = vmatpush.msra.mxu0 %v478
        %512 = vmatpush.msra.mxu0 %v477
        %513 = vmatmul.f32.gmra.mxu0 %v445
        %v514 = vpop.f32.mrf.mxu0
        %v515 = vadd.f32 %v495, %v514
        %516 = vmatmul.f32.gmra.mxu0 %v446
        %v517 = vpop.f32.mrf.mxu0
        %v518 = vadd.f32 %v495, %v517
        %519 = vmatmul.f32.gmra.mxu0 %v447
        %v520 = vpop.f32.mrf.mxu0
        %v521 = vadd.f32 %v495, %v520
        %522 = vmatmul.f32.gmra.mxu0 %v448
        %v523 = vpop.f32.mrf.mxu0
        %v524 = vadd.f32 %v495, %v523
        %525 = vmatmul.f32.gmra.mxu0 %v449
        %v526 = vpop.f32.mrf.mxu0
        %v527 = vadd.f32 %v495, %v526
        %528 = vmatmul.f32.gmra.mxu0 %v450
        %v529 = vpop.f32.mrf.mxu0
        %v530 = vadd.f32 %v495, %v529
        %531 = vmatmul.f32.gmra.mxu0 %v451
        %v532 = vpop.f32.mrf.mxu0
        %v533 = vadd.f32 %v495, %v532
        %534 = vmatmul.f32.gmra.mxu0 %v452
        %v535 = vpop.f32.mrf.mxu0
        %v536 = vadd.f32 %v495, %v535
        %537 = vmatmul.f32.gmra.mxu0 %v453
        %v538 = vpop.f32.mrf.mxu0
        %v539 = vadd.f32 %v495, %v538
        %540 = vmatmul.f32.gmra.mxu0 %v454
        %v541 = vpop.f32.mrf.mxu0
        %v542 = vadd.f32 %v495, %v541
        %543 = vmatmul.f32.gmra.mxu0 %v455
        %v544 = vpop.f32.mrf.mxu0
        %v545 = vadd.f32 %v495, %v544
        %546 = vmatmul.f32.gmra.mxu0 %v456
        %v547 = vpop.f32.mrf.mxu0
        %v548 = vadd.f32 %v495, %v547
        %549 = vmatmul.f32.gmra.mxu0 %v457
        %v550 = vpop.f32.mrf.mxu0
        %v551 = vadd.f32 %v495, %v550
        %552 = vmatmul.f32.gmra.mxu0 %v458
        %v553 = vpop.f32.mrf.mxu0
        %v554 = vadd.f32 %v495, %v553
        %555 = vmatmul.f32.gmra.mxu0 %v459
        %v556 = vpop.f32.mrf.mxu0
        %v557 = vadd.f32 %v495, %v556
        %558 = vmatmul.f32.gmra.mxu0 %v460
        %v559 = vpop.f32.mrf.mxu0
        %v560 = vadd.f32 %v495, %v559
        %561 = vmatmul.f32.gmra.mxu0 %v461
        %v562 = vpop.f32.mrf.mxu0
        %v563 = vadd.f32 %v495, %v562
        %564 = vmatmul.f32.gmra.mxu0 %v462
        %v565 = vpop.f32.mrf.mxu0
        %v566 = vadd.f32 %v495, %v565
        %567 = vmatmul.f32.gmra.mxu0 %v463
        %v568 = vpop.f32.mrf.mxu0
        %v569 = vadd.f32 %v495, %v568
        %570 = vmatmul.f32.gmra.mxu0 %v464
        %v571 = vpop.f32.mrf.mxu0
        %v572 = vadd.f32 %v495, %v571
        %573 = vmatmul.f32.gmra.mxu0 %v465
        %v574 = vpop.f32.mrf.mxu0
        %v575 = vadd.f32 %v495, %v574
        %576 = vmatmul.f32.gmra.mxu0 %v466
        %v577 = vpop.f32.mrf.mxu0
        %v578 = vadd.f32 %v495, %v577
        %579 = vmatmul.f32.gmra.mxu0 %v467
        %v580 = vpop.f32.mrf.mxu0
        %v581 = vadd.f32 %v495, %v580
        %582 = vmatmul.f32.gmra.mxu0 %v468
        %v583 = vpop.f32.mrf.mxu0
        %v584 = vadd.f32 %v495, %v583
        %585 = vmatmul.f32.gmra.mxu0 %v469
        %v586 = vpop.f32.mrf.mxu0
        %v587 = vadd.f32 %v495, %v586
        %588 = vmatmul.f32.gmra.mxu0 %v470
        %v589 = vpop.f32.mrf.mxu0
        %v590 = vadd.f32 %v495, %v589
        %591 = vmatmul.f32.gmra.mxu0 %v471
        %v592 = vpop.f32.mrf.mxu0
        %v593 = vadd.f32 %v495, %v592
        %594 = vmatmul.f32.gmra.mxu0 %v472
        %v595 = vpop.f32.mrf.mxu0
        %v596 = vadd.f32 %v495, %v595
        %597 = vmatmul.f32.gmra.mxu0 %v473
        %v598 = vpop.f32.mrf.mxu0
        %v599 = vadd.f32 %v495, %v598
        %600 = vmatmul.f32.gmra.mxu0 %v474
        %v601 = vpop.f32.mrf.mxu0
        %v602 = vadd.f32 %v495, %v601
        %603 = vmatmul.f32.gmra.mxu0 %v475
        %v604 = vpop.f32.mrf.mxu0
        %v605 = vadd.f32 %v495, %v604
        %606 = vmatmul.f32.gmra.mxu0 %v476
        %v607 = vpop.f32.mrf.mxu0
        %v608 = vadd.f32 %v495, %v607
        %609 = vdwg.mxu0
        %v610 = vmax.f32 %v515, 0.0
        %v611 = vmax.f32 %v518, 0.0
        %v612 = vmax.f32 %v521, 0.0
        %v613 = vmax.f32 %v524, 0.0
        %v614 = vmax.f32 %v527, 0.0
        %v615 = vmax.f32 %v530, 0.0
        %v616 = vmax.f32 %v533, 0.0
        %v617 = vmax.f32 %v536, 0.0
        %v618 = vmax.f32 %v539, 0.0
        %v619 = vmax.f32 %v542, 0.0
        %v620 = vmax.f32 %v545, 0.0
        %v621 = vmax.f32 %v548, 0.0
        %v622 = vmax.f32 %v551, 0.0
        %v623 = vmax.f32 %v554, 0.0
        %v624 = vmax.f32 %v557, 0.0
        %v625 = vmax.f32 %v560, 0.0
        %v626 = vmax.f32 %v563, 0.0
        %v627 = vmax.f32 %v566, 0.0
        %v628 = vmax.f32 %v569, 0.0
        %v629 = vmax.f32 %v572, 0.0
        %v630 = vmax.f32 %v575, 0.0
        %v631 = vmax.f32 %v578, 0.0
        %v632 = vmax.f32 %v581, 0.0
        %v633 = vmax.f32 %v584, 0.0
        %v634 = vmax.f32 %v587, 0.0
        %v635 = vmax.f32 %v590, 0.0
        %v636 = vmax.f32 %v593, 0.0
        %v637 = vmax.f32 %v596, 0.0
        %v638 = vmax.f32 %v599, 0.0
        %v639 = vmax.f32 %v602, 0.0
        %v640 = vmax.f32 %v605, 0.0
        %v641 = vmax.f32 %v608, 0.0
        %642 = vmax.xlane.f32.xlu0 %v610
        %v643 = vpop.xlane.xlu0 %642
        %644 = vmax.xlane.f32.xlu0 %v611
        %v645 = vpop.xlane.xlu0 %644
        %646 = vmax.xlane.f32.xlu0 %v612
        %v647 = vpop.xlane.xlu0 %646
        %648 = vmax.xlane.f32.xlu0 %v613
        %v649 = vpop.xlane.xlu0 %648
        %650 = vmax.xlane.f32.xlu0 %v614
        %v651 = vpop.xlane.xlu0 %650
        %652 = vmax.xlane.f32.xlu0 %v615
        %v653 = vpop.xlane.xlu0 %652
        %654 = vmax.xlane.f32.xlu0 %v616
        %v655 = vpop.xlane.xlu0 %654
        %656 = vmax.xlane.f32.xlu0 %v617
        %v657 = vpop.xlane.xlu0 %656
        %658 = vmax.xlane.f32.xlu0 %v618
        %v659 = vpop.xlane.xlu0 %658
        %660 = vmax.xlane.f32.xlu0 %v619
        %v661 = vpop.xlane.xlu0 %660
        %662 = vmax.xlane.f32.xlu0 %v620
        %v663 = vpop.xlane.xlu0 %662
        %664 = vmax.xlane.f32.xlu0 %v621
        %v665 = vpop.xlane.xlu0 %664
        %666 = vmax.xlane.f32.xlu0 %v622
        %v667 = vpop.xlane.xlu0 %666
        %668 = vmax.xlane.f32.xlu0 %v623
        %v669 = vpop.xlane.xlu0 %668
        %670 = vmax.xlane.f32.xlu0 %v624
        %v671 = vpop.xlane.xlu0 %670
        %672 = vmax.xlane.f32.xlu0 %v625
        %v673 = vpop.xlane.xlu0 %672
        %674 = vmax.xlane.f32.xlu0 %v626
        %v675 = vpop.xlane.xlu0 %674
        %676 = vmax.xlane.f32.xlu0 %v627
        %v677 = vpop.xlane.xlu0 %676
        %678 = vmax.xlane.f32.xlu0 %v628
        %v679 = vpop.xlane.xlu0 %678
        %680 = vmax.xlane.f32.xlu0 %v629
        %v681 = vpop.xlane.xlu0 %680
        %682 = vmax.xlane.f32.xlu0 %v630
        %v683 = vpop.xlane.xlu0 %682
        %684 = vmax.xlane.f32.xlu0 %v631
        %v685 = vpop.xlane.xlu0 %684
        %686 = vmax.xlane.f32.xlu0 %v632
        %v687 = vpop.xlane.xlu0 %686
        %688 = vmax.xlane.f32.xlu0 %v633
        %v689 = vpop.xlane.xlu0 %688
        %690 = vmax.xlane.f32.xlu0 %v634
        %v691 = vpop.xlane.xlu0 %690
        %692 = vmax.xlane.f32.xlu0 %v635
        %v693 = vpop.xlane.xlu0 %692
        %694 = vmax.xlane.f32.xlu0 %v636
        %v695 = vpop.xlane.xlu0 %694
        %696 = vmax.xlane.f32.xlu0 %v637
        %v697 = vpop.xlane.xlu0 %696
        %698 = vmax.xlane.f32.xlu0 %v638
        %v699 = vpop.xlane.xlu0 %698
        %700 = vmax.xlane.f32.xlu0 %v639
        %v701 = vpop.xlane.xlu0 %700
        %702 = vmax.xlane.f32.xlu0 %v640
        %v703 = vpop.xlane.xlu0 %702
        %704 = vmax.xlane.f32.xlu0 %v641
        %v705 = vpop.xlane.xlu0 %704
        %v706 = vsub.f32 %v610, %v643
        %v707 = vsub.f32 %v611, %v645
        %v708 = vsub.f32 %v612, %v647
        %v709 = vsub.f32 %v613, %v649
        %v710 = vsub.f32 %v614, %v651
        %v711 = vsub.f32 %v615, %v653
        %v712 = vsub.f32 %v616, %v655
        %v713 = vsub.f32 %v617, %v657
        %v714 = vsub.f32 %v618, %v659
        %v715 = vsub.f32 %v619, %v661
        %v716 = vsub.f32 %v620, %v663
        %v717 = vsub.f32 %v621, %v665
        %v718 = vsub.f32 %v622, %v667
        %v719 = vsub.f32 %v623, %v669
        %v720 = vsub.f32 %v624, %v671
        %v721 = vsub.f32 %v625, %v673
        %v722 = vsub.f32 %v626, %v675
        %v723 = vsub.f32 %v627, %v677
        %v724 = vsub.f32 %v628, %v679
        %v725 = vsub.f32 %v629, %v681
        %v726 = vsub.f32 %v630, %v683
        %v727 = vsub.f32 %v631, %v685
        %v728 = vsub.f32 %v632, %v687
        %v729 = vsub.f32 %v633, %v689
        %v730 = vsub.f32 %v634, %v691
        %v731 = vsub.f32 %v635, %v693
        %v732 = vsub.f32 %v636, %v695
        %v733 = vsub.f32 %v637, %v697
        %v734 = vsub.f32 %v638, %v699
        %v735 = vsub.f32 %v639, %v701
        %v736 = vsub.f32 %v640, %v703
        %v737 = vsub.f32 %v641, %v705
        %v738 = vmul.f32 %v706, 1.442695
        %v739 = vpow.pop %v738
        %v740 = vmul.f32 %v707, 1.442695
        %v741 = vpow.pop %v740
        %v742 = vmul.f32 %v708, 1.442695
        %v743 = vpow.pop %v742
        %v744 = vmul.f32 %v709, 1.442695
        %v745 = vpow.pop %v744
        %v746 = vmul.f32 %v710, 1.442695
        %v747 = vpow.pop %v746
        %v748 = vmul.f32 %v711, 1.442695
        %v749 = vpow.pop %v748
        %v750 = vmul.f32 %v712, 1.442695
        %v751 = vpow.pop %v750
        %v752 = vmul.f32 %v713, 1.442695
        %v753 = vpow.pop %v752
        %v754 = vmul.f32 %v714, 1.442695
        %v755 = vpow.pop %v754
        %v756 = vmul.f32 %v715, 1.442695
        %v757 = vpow.pop %v756
        %v758 = vmul.f32 %v716, 1.442695
        %v759 = vpow.pop %v758
        %v760 = vmul.f32 %v717, 1.442695
        %v761 = vpow.pop %v760
        %v762 = vmul.f32 %v718, 1.442695
        %v763 = vpow.pop %v762
        %v764 = vmul.f32 %v719, 1.442695
        %v765 = vpow.pop %v764
        %v766 = vmul.f32 %v720, 1.442695
        %v767 = vpow.pop %v766
        %v768 = vmul.f32 %v721, 1.442695
        %v769 = vpow.pop %v768
        %v770 = vmul.f32 %v722, 1.442695
        %v771 = vpow.pop %v770
        %v772 = vmul.f32 %v723, 1.442695
        %v773 = vpow.pop %v772
        %v774 = vmul.f32 %v724, 1.442695
        %v775 = vpow.pop %v774
        %v776 = vmul.f32 %v725, 1.442695
        %v777 = vpow.pop %v776
        %v778 = vmul.f32 %v726, 1.442695
        %v779 = vpow.pop %v778
        %v780 = vmul.f32 %v727, 1.442695
        %v781 = vpow.pop %v780
        %v782 = vmul.f32 %v728, 1.442695
        %v783 = vpow.pop %v782
        %v784 = vmul.f32 %v729, 1.442695
        %v785 = vpow.pop %v784
        %v786 = vmul.f32 %v730, 1.442695
        %v787 = vpow.pop %v786
        %v788 = vmul.f32 %v731, 1.442695
        %v789 = vpow.pop %v788
        %v790 = vmul.f32 %v732, 1.442695
        %v791 = vpow.pop %v790
        %v792 = vmul.f32 %v733, 1.442695
        %v793 = vpow.pop %v792
        %v794 = vmul.f32 %v734, 1.442695
        %v795 = vpow.pop %v794
        %v796 = vmul.f32 %v735, 1.442695
        %v797 = vpow.pop %v796
        %v798 = vmul.f32 %v736, 1.442695
        %v799 = vpow.pop %v798
        %v800 = vmul.f32 %v737, 1.442695
        %v801 = vpow.pop %v800
        %802 = vadd.xlane.f32.xlu0 %v739
        %v803 = vpop.xlane.xlu0 %802
        %804 = vadd.xlane.f32.xlu0 %v741
        %v805 = vpop.xlane.xlu0 %804
        %806 = vadd.xlane.f32.xlu0 %v743
        %v807 = vpop.xlane.xlu0 %806
        %808 = vadd.xlane.f32.xlu0 %v745
        %v809 = vpop.xlane.xlu0 %808
        %810 = vadd.xlane.f32.xlu0 %v747
        %v811 = vpop.xlane.xlu0 %810
        %812 = vadd.xlane.f32.xlu0 %v749
        %v813 = vpop.xlane.xlu0 %812
        %814 = vadd.xlane.f32.xlu0 %v751
        %v815 = vpop.xlane.xlu0 %814
        %816 = vadd.xlane.f32.xlu0 %v753
        %v817 = vpop.xlane.xlu0 %816
        %818 = vadd.xlane.f32.xlu0 %v755
        %v819 = vpop.xlane.xlu0 %818
        %820 = vadd.xlane.f32.xlu0 %v757
        %v821 = vpop.xlane.xlu0 %820
        %822 = vadd.xlane.f32.xlu0 %v759
        %v823 = vpop.xlane.xlu0 %822
        %824 = vadd.xlane.f32.xlu0 %v761
        %v825 = vpop.xlane.xlu0 %824
        %826 = vadd.xlane.f32.xlu0 %v763
        %v827 = vpop.xlane.xlu0 %826
        %828 = vadd.xlane.f32.xlu0 %v765
        %v829 = vpop.xlane.xlu0 %828
        %830 = vadd.xlane.f32.xlu0 %v767
        %v831 = vpop.xlane.xlu0 %830
        %832 = vadd.xlane.f32.xlu0 %v769
        %v833 = vpop.xlane.xlu0 %832
        %834 = vadd.xlane.f32.xlu0 %v771
        %v835 = vpop.xlane.xlu0 %834
        %836 = vadd.xlane.f32.xlu0 %v773
        %v837 = vpop.xlane.xlu0 %836
        %838 = vadd.xlane.f32.xlu0 %v775
        %v839 = vpop.xlane.xlu0 %838
        %840 = vadd.xlane.f32.xlu0 %v777
        %v841 = vpop.xlane.xlu0 %840
        %842 = vadd.xlane.f32.xlu0 %v779
        %v843 = vpop.xlane.xlu0 %842
        %844 = vadd.xlane.f32.xlu0 %v781
        %v845 = vpop.xlane.xlu0 %844
        %846 = vadd.xlane.f32.xlu0 %v783
        %v847 = vpop.xlane.xlu0 %846
        %848 = vadd.xlane.f32.xlu0 %v785
        %v849 = vpop.xlane.xlu0 %848
        %850 = vadd.xlane.f32.xlu0 %v787
        %v851 = vpop.xlane.xlu0 %850
        %852 = vadd.xlane.f32.xlu0 %v789
        %v853 = vpop.xlane.xlu0 %852
        %854 = vadd.xlane.f32.xlu0 %v791
        %v855 = vpop.xlane.xlu0 %854
        %856 = vadd.xlane.f32.xlu0 %v793
        %v857 = vpop.xlane.xlu0 %856
        %858 = vadd.xlane.f32.xlu0 %v795
        %v859 = vpop.xlane.xlu0 %858
        %860 = vadd.xlane.f32.xlu0 %v797
        %v861 = vpop.xlane.xlu0 %860
        %862 = vadd.xlane.f32.xlu0 %v799
        %v863 = vpop.xlane.xlu0 %862
        %864 = vadd.xlane.f32.xlu0 %v801
        %v865 = vpop.xlane.xlu0 %864
        %v866 = vrcp.pop %v803
        %v867 = vrcp.pop %v805
        %v868 = vrcp.pop %v807
        %v869 = vrcp.pop %v809
        %v870 = vrcp.pop %v811
        %v871 = vrcp.pop %v813
        %v872 = vrcp.pop %v815
        %v873 = vrcp.pop %v817
        %v874 = vrcp.pop %v819
        %v875 = vrcp.pop %v821
        %v876 = vrcp.pop %v823
        %v877 = vrcp.pop %v825
        %v878 = vrcp.pop %v827
        %v879 = vrcp.pop %v829
        %v880 = vrcp.pop %v831
        %v881 = vrcp.pop %v833
        %v882 = vrcp.pop %v835
        %v883 = vrcp.pop %v837
        %v884 = vrcp.pop %v839
        %v885 = vrcp.pop %v841
        %v886 = vrcp.pop %v843
        %v887 = vrcp.pop %v845
        %v888 = vrcp.pop %v847
        %v889 = vrcp.pop %v849
        %v890 = vrcp.pop %v851
        %v891 = vrcp.pop %v853
        %v892 = vrcp.pop %v855
        %v893 = vrcp.pop %v857
        %v894 = vrcp.pop %v859
        %v895 = vrcp.pop %v861
        %v896 = vrcp.pop %v863
        %v897 = vrcp.pop %v865
        %v898 = vmul.f32 %v739, %v866
        %v899 = vmul.f32 %v741, %v867
        %v900 = vmul.f32 %v743, %v868
        %v901 = vmul.f32 %v745, %v869
        %v902 = vmul.f32 %v747, %v870
        %v903 = vmul.f32 %v749, %v871
        %v904 = vmul.f32 %v751, %v872
        %v905 = vmul.f32 %v753, %v873
        %v906 = vmul.f32 %v755, %v874
        %v907 = vmul.f32 %v757, %v875
        %v908 = vmul.f32 %v759, %v876
        %v909 = vmul.f32 %v761, %v877
        %v910 = vmul.f32 %v763, %v878
        %v911 = vmul.f32 %v765, %v879
        %v912 = vmul.f32 %v767, %v880
        %v913 = vmul.f32 %v769, %v881
        %v914 = vmul.f32 %v771, %v882
        %v915 = vmul.f32 %v773, %v883
        %v916 = vmul.f32 %v775, %v884
        %v917 = vmul.f32 %v777, %v885
        %v918 = vmul.f32 %v779, %v886
        %v919 = vmul.f32 %v781, %v887
        %v920 = vmul.f32 %v783, %v888
        %v921 = vmul.f32 %v785, %v889
        %v922 = vmul.f32 %v787, %v890
        %v923 = vmul.f32 %v789, %v891
        %v924 = vmul.f32 %v791, %v892
        %v925 = vmul.f32 %v793, %v893
        %v926 = vmul.f32 %v795, %v894
        %v927 = vmul.f32 %v797, %v895
        %v928 = vmul.f32 %v799, %v896
        %v929 = vmul.f32 %v801, %v897
        %930 = vst [vmem:[%s277] sm:$0xff] %v898
        %931 = vst [vmem:[%s277 + $0x8] sm:$0xff] %v899
        %932 = vst [vmem:[%s277 + $0x10] sm:$0xff] %v900
        %933 = vst [vmem:[%s277 + $0x18] sm:$0xff] %v901
        %934 = vst [vmem:[%s277 + $0x20] sm:$0xff] %v902
        %935 = vst [vmem:[%s277 + $0x28] sm:$0xff] %v903
        %936 = vst [vmem:[%s277 + $0x30] sm:$0xff] %v904
        %937 = vst [vmem:[%s277 + $0x38] sm:$0xff] %v905
        %938 = vst [vmem:[%s277 + $0x40] sm:$0xff] %v906
        %939 = vst [vmem:[%s277 + $0x48] sm:$0xff] %v907
        %940 = vst [vmem:[%s277 + $0x50] sm:$0xff] %v908
        %941 = vst [vmem:[%s277 + $0x58] sm:$0xff] %v909
        %942 = vst [vmem:[%s277 + $0x60] sm:$0xff] %v910
        %943 = vst [vmem:[%s277 + $0x68] sm:$0xff] %v911
        %944 = vst [vmem:[%s277 + $0x70] sm:$0xff] %v912
        %945 = vst [vmem:[%s277 + $0x78] sm:$0xff] %v913
        %946 = vst [vmem:[%s277 + $0x80] sm:$0xff] %v914
        %947 = vst [vmem:[%s277 + $0x88] sm:$0xff] %v915
        %948 = vst [vmem:[%s277 + $0x90] sm:$0xff] %v916
        %949 = vst [vmem:[%s277 + $0x98] sm:$0xff] %v917
        %950 = vst [vmem:[%s277 + $0xa0] sm:$0xff] %v918
        %951 = vst [vmem:[%s277 + $0xa8] sm:$0xff] %v919
        %952 = vst [vmem:[%s277 + $0xb0] sm:$0xff] %v920
        %953 = vst [vmem:[%s277 + $0xb8] sm:$0xff] %v921
        %954 = vst [vmem:[%s277 + $0xc0] sm:$0xff] %v922
        %955 = vst [vmem:[%s277 + $0xc8] sm:$0xff] %v923
        %956 = vst [vmem:[%s277 + $0xd0] sm:$0xff] %v924
        %957 = vst [vmem:[%s277 + $0xd8] sm:$0xff] %v925
        %958 = vst [vmem:[%s277 + $0xe0] sm:$0xff] %v926
        %959 = vst [vmem:[%s277 + $0xe8] sm:$0xff] %v927
        %960 = vst [vmem:[%s277 + $0xf0] sm:$0xff] %v928
        %961 = vst [vmem:[%s277 + $0xf8] sm:$0xff] %v929
        %s962 = sand.u32 %s141, 1
        %s963 = scalar_lea.sflag [#allocation4], %s962
        %s964 = sand.u32 %s141, 1
        %s965 = smul.addr %s964, 256
        %s966 = scalar_lea.vmem [#allocation8], %s965
        // Predicated region
        $region53: #{tpu_custom_call.1} parent=39 // pred_check
          %p967 = pneg %p151
        $region54: #{tpu_custom_call.1} parent=39 // pred_check_branch
          %969 = sbr.rel (%p967) target = $region56
        $region55: #{tpu_custom_call.1} parent=39 // pred_region
          %s970 = smul.u32 32, %s23
          %972 = vsyncadd %s963, 0
          %s973 = smul.addr %s970, 8
          %s974 = scalar_lea.hbm %s5, %s973
          %s975 = sshll.u32 %s966, 4
          %s976 = int_to_ptr.vmem [resolvable:$true] %s975
          %s977 = sshll.u32 %s974, 4
          %s978 = int_to_ptr.hbm [resolvable:$true] %s977
          %983 = dma.vmem_to_hbm [thread:$0]  %s976, 4096, %s978, %s963, 128, 128, 8
        $region56: #{tpu_custom_call.1} parent=39 // pred_fallthru
          _
      $region40: #{tpu_custom_call.1} parent=5 // pred_fallthru
        _
      %p984 = scmp.le.s32.totalorder 2, %s18
      // Predicated region
      $region57: #{tpu_custom_call.1} parent=5 // pred_check
        %p985 = pneg %p984
      $region58: #{tpu_custom_call.1} parent=5 // pred_check_branch
        %987 = sbr.rel (%p985) target = $region60
      $region59: #{tpu_custom_call.1} parent=5 // pred_region
        %s988 = ssub.s32 %s18, 2
        // Predicated region
        $region61: #{tpu_custom_call.1} parent=59 // pred_check
          %p989 = pneg %p157
        $region62: #{tpu_custom_call.1} parent=59 // pred_check_branch
          %991 = sbr.rel (%p989) target = $region64
        $region63: #{tpu_custom_call.1} parent=59 // pred_region
          %s992 = sand.u32 %s142, 1
          %s993 = scalar_lea.sflag [#allocation4], %s992
          %s994 = sand.u32 %s142, 1
          %s995 = smul.addr %s994, 256
          %s996 = scalar_lea.vmem [#allocation8], %s995
          %998 = dma.done %s993, 4096
        $region64: #{tpu_custom_call.1} parent=59 // pred_fallthru
          _
      $region60: #{tpu_custom_call.1} parent=5 // pred_fallthru
        _
    $region6: #{tpu_custom_call.1} parent=1 // loop_footer
      %s22 = sadd.s32 1, %s18
    $region7: #{tpu_custom_call.1} parent=1 // loop_footer_branch
      %17 = sbr.rel target = $region3
    $region8: #{tpu_custom_call.1} parent=1 // loop_exit
      _
    %999 = vsyncpa [#allocation3], 1
    %s1000 = scalar_lea.sflag [#allocation3], 1
    %1001 = vsyncpa %s1000, 1
    %1002 = vsyncpa [#allocation6], 1
    %1003 = vsyncpa [#allocation4], 1
    %s1004 = scalar_lea.sflag [#allocation4], 1
    %1005 = vsyncpa %s1004, 1

</llo_original>
